<compile_context>
chip_gen: v5e
topology: v5e:2x2
jax: 0.10.0
libtpu: 0.0.40
codegen_flags: <defaults>
</compile_context>

<pallas_src>
import jax
import jax.numpy as jnp
from jax.experimental import pallas as pl
from jax.experimental.pallas import tpu as pltpu

# --- sizes (small, consistent with the module) ------------------------------
D_STATE   = 4      # env.observation_space.shape[0]  (small synthetic env)
D_ACTION  = 2      # env.action_space.shape[0]
ENSEMBLE  = 2      # self.ensemble_size
N_HIDDEN  = 32     # self.n_hidden (512 in the module; scaled down for demo)
N_LAYERS  = 4      # self.n_layers: 4 swish layers + 1 linear head -> 2*d_state
BATCH     = 8

MIN_LOG_VAR = -5.0
MAX_LOG_VAR = 1.0


def _swish(x):
    return x * jax.nn.sigmoid(x)


# --- Pallas kernel: one ensemble member per grid step ------------------------
def ensemble_member_kernel(s_ref, a_ref,
                           w0s_ref, w0a_ref, b0_ref,
                           wh_ref, bh_ref,
                           wo_ref, bo_ref,
                           out_ref):
    s = s_ref[0]                                   # (B, d_state)
    a = a_ref[0]                                   # (B, d_action)

    # Layer 0: split-weight matmul replaces the lane-axis concat of [s | a].
    h = _swish(jnp.dot(s, w0s_ref[0], preferred_element_type=jnp.float32)
               + jnp.dot(a, w0a_ref[0], preferred_element_type=jnp.float32)
               + b0_ref[0])

    # Hidden layers 1..N_LAYERS-1 (packed weights, static index, unrolled).
    for l in range(N_LAYERS - 1):
        h = _swish(jnp.dot(h, wh_ref[0, l], preferred_element_type=jnp.float32)
                   + bh_ref[0, l])

    # Linear head -> (B, 2*d_state) = [mu | log_var].
    out = jnp.dot(h, wo_ref[0], preferred_element_type=jnp.float32) + bo_ref[0]

    # MAX-style bounded log-variance on the full head width, selected with a
    # lane mask (lanes >= d_state are the variance half) — no unaligned slice.
    lane = jax.lax.broadcasted_iota(jnp.int32, (BATCH, 2 * D_STATE), 1)
    is_var = lane >= D_STATE
    lv = MAX_LOG_VAR - jax.nn.softplus(MAX_LOG_VAR - out)
    lv = MIN_LOG_VAR + jax.nn.softplus(lv - MIN_LOG_VAR)
    var = jnp.exp(lv)

    # Single lane-contiguous store per member: [mu | var].
    out_ref[0] = jnp.where(is_var, var, out)


def forward_all_pallas(states, actions, params):
    """Ensemble model forward_all(states, actions) -> (mu, var)."""
    w0, b0, w1, b1, w2, b2, w3, b3, w4, b4 = params

    # Static wrapper-side packing: fewer DMA descriptors, no in-kernel concat.
    w0_s = w0[:, :D_STATE, :]                       # (E, d_state, H)
    w0_a = w0[:, D_STATE:, :]                       # (E, d_action, H)
    w_hid = jnp.stack([w1, w2, w3], axis=1)         # (E, 3, H, H)
    b_hid = jnp.stack([b1, b2, b3], axis=1)         # (E, 3, 1, H)

    out = pl.pallas_call(
        ensemble_member_kernel,
        out_shape=jax.ShapeDtypeStruct((ENSEMBLE, BATCH, 2 * D_STATE), jnp.float32),
        grid_spec=pltpu.PrefetchScalarGridSpec(
            num_scalar_prefetch=0,
            grid=(ENSEMBLE,),
            in_specs=[
                pl.BlockSpec((1, BATCH, D_STATE),                   lambda e: (e, 0, 0)),
                pl.BlockSpec((1, BATCH, D_ACTION),                  lambda e: (e, 0, 0)),
                pl.BlockSpec((1, D_STATE, N_HIDDEN),                lambda e: (e, 0, 0)),
                pl.BlockSpec((1, D_ACTION, N_HIDDEN),               lambda e: (e, 0, 0)),
                pl.BlockSpec((1, 1, N_HIDDEN),                      lambda e: (e, 0, 0)),
                pl.BlockSpec((1, N_LAYERS - 1, N_HIDDEN, N_HIDDEN), lambda e: (e, 0, 0, 0)),
                pl.BlockSpec((1, N_LAYERS - 1, 1, N_HIDDEN),        lambda e: (e, 0, 0, 0)),
                pl.BlockSpec((1, N_HIDDEN, 2 * D_STATE),            lambda e: (e, 0, 0)),
                pl.BlockSpec((1, 1, 2 * D_STATE),                   lambda e: (e, 0, 0)),
            ],
            out_specs=pl.BlockSpec((1, BATCH, 2 * D_STATE), lambda e: (e, 0, 0)),
        ),
        compiler_params=pltpu.CompilerParams(dimension_semantics=("parallel",)),
    )(states.astype(jnp.float32), actions.astype(jnp.float32),
      w0_s, w0_a, b0, w_hid, b_hid, w4, b4)

    # mu/var split done in the wrapper on the single lane-dense output buffer.
    return out[..., :D_STATE], out[..., D_STATE:]


# --- plain-JAX reference for correctness ------------------------------------
def forward_all_ref(states, actions, params):
    x = jnp.concatenate([states, actions], axis=-1).astype(jnp.float32)
    w0, b0, w1, b1, w2, b2, w3, b3, w4, b4 = params
    h = _swish(jnp.einsum('ebi,eio->ebo', x, w0) + b0)
    h = _swish(jnp.einsum('ebi,eio->ebo', h, w1) + b1)
    h = _swish(jnp.einsum('ebi,eio->ebo', h, w2) + b2)
    h = _swish(jnp.einsum('ebi,eio->ebo', h, w3) + b3)
    out = jnp.einsum('ebi,eio->ebo', h, w4) + b4
    mu = out[..., :D_STATE]
    logvar = out[..., D_STATE:]
    logvar = MAX_LOG_VAR - jax.nn.softplus(MAX_LOG_VAR - logvar)
    logvar = MIN_LOG_VAR + jax.nn.softplus(logvar - MIN_LOG_VAR)
    return mu, jnp.exp(logvar)


# --- deterministic parameter init (shapes from _build_model) ----------------
def init_params(key):
    dims = [D_STATE + D_ACTION] + [N_HIDDEN] * N_LAYERS + [2 * D_STATE]
    params = []
    for din, dout in zip(dims[:-1], dims[1:]):
        key, kw = jax.random.split(key)
        scale = 1.0 / jnp.sqrt(jnp.float32(din))
        w = jax.random.normal(kw, (ENSEMBLE, din, dout), jnp.float32) * scale
        b = jnp.zeros((ENSEMBLE, 1, dout), jnp.float32)
        params += [w, b]
    return params


if __name__ == "__main__":
    key = jax.random.PRNGKey(0)
    key, ks, ka, kp, kw = jax.random.split(key, 5)

    params = init_params(kp)
    states = jax.random.normal(ks, (ENSEMBLE, BATCH, D_STATE), jnp.float32)
    actions = jax.random.uniform(ka, (ENSEMBLE, BATCH, D_ACTION), jnp.float32,
                                 minval=-1.0, maxval=1.0)

    # forward() warm-up branch semantics (step_num <= n_warm_up_steps):
    #   action = env.action_space.sample(); probs = ones_like(action)/len(action)
    action = jax.random.uniform(kw, (D_ACTION,), jnp.float32, minval=-1.0, maxval=1.0)
    action_probs = jnp.ones((D_ACTION,), jnp.float32) / D_ACTION
    # TODO(synk): post-warm-up branch requires the full SAC agent / Imagination
    # MDP training loop (env stepping, replay buffer, wandb) — no tensor kernel.

    mu, var = forward_all_pallas(states, actions, params)
    mu_r, var_r = forward_all_ref(states, actions, params)
    jax.block_until_ready((action, action_probs, mu, var))

    assert jnp.allclose(mu, mu_r, atol=1e-5, rtol=1e-5)
    assert jnp.allclose(var, var_r, atol=1e-5, rtol=1e-5)
    print("KERNEL_OK")
</pallas_src>

<mosaic_0001>
module attributes {stable_mosaic.version = 11 : i64} {
  func.func @ensemble_member_kernel(%arg0: i32, %arg1: memref<1x8x4xf32, #tpu.memory_space<vmem>>, %arg2: memref<1x8x2xf32, #tpu.memory_space<vmem>>, %arg3: memref<1x4x32xf32, #tpu.memory_space<vmem>>, %arg4: memref<1x2x32xf32, #tpu.memory_space<vmem>>, %arg5: memref<1x1x32xf32, #tpu.memory_space<vmem>>, %arg6: memref<1x3x32x32xf32, #tpu.memory_space<vmem>>, %arg7: memref<1x3x1x32xf32, #tpu.memory_space<vmem>>, %arg8: memref<1x32x8xf32, #tpu.memory_space<vmem>>, %arg9: memref<1x1x8xf32, #tpu.memory_space<vmem>>, %arg10: memref<1x8x8xf32, #tpu.memory_space<vmem>>) attributes {dimension_semantics = [#tpu.dimension_semantics<parallel>], iteration_bounds = array<i64: 2>, scalar_prefetch = 0 : i64, scratch_operands = 0 : i64, tpu.core_type = #tpu.core_type<tc>, window_params = [{transform_indices = @transform_0, window_bounds = array<i64: 1, 8, 4>}, {transform_indices = @transform_1, window_bounds = array<i64: 1, 8, 2>}, {transform_indices = @transform_2, window_bounds = array<i64: 1, 4, 32>}, {transform_indices = @transform_3, window_bounds = array<i64: 1, 2, 32>}, {transform_indices = @transform_4, window_bounds = array<i64: 1, 1, 32>}, {transform_indices = @transform_5, window_bounds = array<i64: 1, 3, 32, 32>}, {transform_indices = @transform_6, window_bounds = array<i64: 1, 3, 1, 32>}, {transform_indices = @transform_7, window_bounds = array<i64: 1, 32, 8>}, {transform_indices = @transform_8, window_bounds = array<i64: 1, 1, 8>}, {transform_indices = @transform_9, window_bounds = array<i64: 1, 8, 8>}]} {
    %c0 = arith.constant 0 : index
    %c0_0 = arith.constant 0 : index
    %c0_1 = arith.constant 0 : index
    %0 = vector.load %arg1[%c0, %c0_0, %c0_1] : memref<1x8x4xf32, #tpu.memory_space<vmem>>, vector<1x8x4xf32>
    %1 = vector.shape_cast %0 : vector<1x8x4xf32> to vector<8x4xf32>
    %c0_2 = arith.constant 0 : index
    %c0_3 = arith.constant 0 : index
    %c0_4 = arith.constant 0 : index
    %2 = vector.load %arg2[%c0_2, %c0_3, %c0_4] : memref<1x8x2xf32, #tpu.memory_space<vmem>>, vector<1x8x2xf32>
    %3 = vector.shape_cast %2 : vector<1x8x2xf32> to vector<8x2xf32>
    %c0_5 = arith.constant 0 : index
    %c0_6 = arith.constant 0 : index
    %c0_7 = arith.constant 0 : index
    %4 = vector.load %arg3[%c0_5, %c0_6, %c0_7] : memref<1x4x32xf32, #tpu.memory_space<vmem>>, vector<1x4x32xf32>
    %5 = vector.shape_cast %4 : vector<1x4x32xf32> to vector<4x32xf32>
    %cst = arith.constant dense<0.000000e+00> : vector<8x32xf32>
    %6 = tpu.matmul %1, %5, %cst {dimension_numbers = #tpu.dot_dimension_numbers<[1], [0], [0], [1], [0, 0, 1, 1], [], []>} : vector<8x4xf32>, vector<4x32xf32>, vector<8x32xf32> -> vector<8x32xf32>
    %c0_8 = arith.constant 0 : index
    %c0_9 = arith.constant 0 : index
    %c0_10 = arith.constant 0 : index
    %7 = vector.load %arg4[%c0_8, %c0_9, %c0_10] : memref<1x2x32xf32, #tpu.memory_space<vmem>>, vector<1x2x32xf32>
    %8 = vector.shape_cast %7 : vector<1x2x32xf32> to vector<2x32xf32>
    %cst_11 = arith.constant dense<0.000000e+00> : vector<8x32xf32>
    %9 = tpu.matmul %3, %8, %cst_11 {dimension_numbers = #tpu.dot_dimension_numbers<[1], [0], [0], [1], [0, 0, 1, 1], [], []>} : vector<8x2xf32>, vector<2x32xf32>, vector<8x32xf32> -> vector<8x32xf32>
    %10 = arith.addf %6, %9 : vector<8x32xf32>
    %c0_12 = arith.constant 0 : index
    %c0_13 = arith.constant 0 : index
    %c0_14 = arith.constant 0 : index
    %11 = vector.load %arg5[%c0_12, %c0_13, %c0_14] : memref<1x1x32xf32, #tpu.memory_space<vmem>>, vector<1x1x32xf32>
    %12 = vector.shape_cast %11 : vector<1x1x32xf32> to vector<1x32xf32>
    %13 = vector.broadcast %12 : vector<1x32xf32> to vector<8x32xf32>
    %14 = arith.addf %10, %13 : vector<8x32xf32>
    %15 = arith.negf %14 : vector<8x32xf32>
    %16 = math.exp %15 : vector<8x32xf32>
    %cst_15 = arith.constant 1.000000e+00 : f32
    %17 = vector.broadcast %cst_15 : f32 to vector<8x32xf32>
    %18 = arith.addf %17, %16 : vector<8x32xf32>
    %19 = arith.divf %17, %18 : vector<8x32xf32>
    %20 = arith.mulf %14, %19 : vector<8x32xf32>
    %c0_16 = arith.constant 0 : index
    %c0_17 = arith.constant 0 : index
    %c0_18 = arith.constant 0 : index
    %c0_19 = arith.constant 0 : index
    %21 = vector.load %arg6[%c0_16, %c0_17, %c0_18, %c0_19] : memref<1x3x32x32xf32, #tpu.memory_space<vmem>>, vector<1x1x32x32xf32>
    %22 = vector.shape_cast %21 : vector<1x1x32x32xf32> to vector<32x32xf32>
    %cst_20 = arith.constant dense<0.000000e+00> : vector<8x32xf32>
    %23 = tpu.matmul %20, %22, %cst_20 {dimension_numbers = #tpu.dot_dimension_numbers<[1], [0], [0], [1], [0, 0, 1, 1], [], []>} : vector<8x32xf32>, vector<32x32xf32>, vector<8x32xf32> -> vector<8x32xf32>
    %c0_21 = arith.constant 0 : index
    %c0_22 = arith.constant 0 : index
    %c0_23 = arith.constant 0 : index
    %c0_24 = arith.constant 0 : index
    %24 = vector.load %arg7[%c0_21, %c0_22, %c0_23, %c0_24] : memref<1x3x1x32xf32, #tpu.memory_space<vmem>>, vector<1x1x1x32xf32>
    %25 = vector.shape_cast %24 : vector<1x1x1x32xf32> to vector<1x32xf32>
    %26 = vector.broadcast %25 : vector<1x32xf32> to vector<8x32xf32>
    %27 = arith.addf %23, %26 : vector<8x32xf32>
    %28 = arith.negf %27 : vector<8x32xf32>
    %29 = math.exp %28 : vector<8x32xf32>
    %cst_25 = arith.constant 1.000000e+00 : f32
    %30 = vector.broadcast %cst_25 : f32 to vector<8x32xf32>
    %31 = arith.addf %30, %29 : vector<8x32xf32>
    %32 = arith.divf %30, %31 : vector<8x32xf32>
    %33 = arith.mulf %27, %32 : vector<8x32xf32>
    %c0_26 = arith.constant 0 : index
    %c1 = arith.constant 1 : index
    %c0_27 = arith.constant 0 : index
    %c0_28 = arith.constant 0 : index
    %34 = vector.load %arg6[%c0_26, %c1, %c0_27, %c0_28] : memref<1x3x32x32xf32, #tpu.memory_space<vmem>>, vector<1x1x32x32xf32>
    %35 = vector.shape_cast %34 : vector<1x1x32x32xf32> to vector<32x32xf32>
    %cst_29 = arith.constant dense<0.000000e+00> : vector<8x32xf32>
    %36 = tpu.matmul %33, %35, %cst_29 {dimension_numbers = #tpu.dot_dimension_numbers<[1], [0], [0], [1], [0, 0, 1, 1], [], []>} : vector<8x32xf32>, vector<32x32xf32>, vector<8x32xf32> -> vector<8x32xf32>
    %c0_30 = arith.constant 0 : index
    %c1_31 = arith.constant 1 : index
    %c0_32 = arith.constant 0 : index
    %c0_33 = arith.constant 0 : index
    %37 = vector.load %arg7[%c0_30, %c1_31, %c0_32, %c0_33] : memref<1x3x1x32xf32, #tpu.memory_space<vmem>>, vector<1x1x1x32xf32>
    %38 = vector.shape_cast %37 : vector<1x1x1x32xf32> to vector<1x32xf32>
    %39 = vector.broadcast %38 : vector<1x32xf32> to vector<8x32xf32>
    %40 = arith.addf %36, %39 : vector<8x32xf32>
    %41 = arith.negf %40 : vector<8x32xf32>
    %42 = math.exp %41 : vector<8x32xf32>
    %cst_34 = arith.constant 1.000000e+00 : f32
    %43 = vector.broadcast %cst_34 : f32 to vector<8x32xf32>
    %44 = arith.addf %43, %42 : vector<8x32xf32>
    %45 = arith.divf %43, %44 : vector<8x32xf32>
    %46 = arith.mulf %40, %45 : vector<8x32xf32>
    %c0_35 = arith.constant 0 : index
    %c2 = arith.constant 2 : index
    %c0_36 = arith.constant 0 : index
    %c0_37 = arith.constant 0 : index
    %47 = vector.load %arg6[%c0_35, %c2, %c0_36, %c0_37] : memref<1x3x32x32xf32, #tpu.memory_space<vmem>>, vector<1x1x32x32xf32>
    %48 = vector.shape_cast %47 : vector<1x1x32x32xf32> to vector<32x32xf32>
    %cst_38 = arith.constant dense<0.000000e+00> : vector<8x32xf32>
    %49 = tpu.matmul %46, %48, %cst_38 {dimension_numbers = #tpu.dot_dimension_numbers<[1], [0], [0], [1], [0, 0, 1, 1], [], []>} : vector<8x32xf32>, vector<32x32xf32>, vector<8x32xf32> -> vector<8x32xf32>
    %c0_39 = arith.constant 0 : index
    %c2_40 = arith.constant 2 : index
    %c0_41 = arith.constant 0 : index
    %c0_42 = arith.constant 0 : index
    %50 = vector.load %arg7[%c0_39, %c2_40, %c0_41, %c0_42] : memref<1x3x1x32xf32, #tpu.memory_space<vmem>>, vector<1x1x1x32xf32>
    %51 = vector.shape_cast %50 : vector<1x1x1x32xf32> to vector<1x32xf32>
    %52 = vector.broadcast %51 : vector<1x32xf32> to vector<8x32xf32>
    %53 = arith.addf %49, %52 : vector<8x32xf32>
    %54 = arith.negf %53 : vector<8x32xf32>
    %55 = math.exp %54 : vector<8x32xf32>
    %cst_43 = arith.constant 1.000000e+00 : f32
    %56 = vector.broadcast %cst_43 : f32 to vector<8x32xf32>
    %57 = arith.addf %56, %55 : vector<8x32xf32>
    %58 = arith.divf %56, %57 : vector<8x32xf32>
    %59 = arith.mulf %53, %58 : vector<8x32xf32>
    %c0_44 = arith.constant 0 : index
    %c0_45 = arith.constant 0 : index
    %c0_46 = arith.constant 0 : index
    %60 = vector.load %arg8[%c0_44, %c0_45, %c0_46] : memref<1x32x8xf32, #tpu.memory_space<vmem>>, vector<1x32x8xf32>
    %61 = vector.shape_cast %60 : vector<1x32x8xf32> to vector<32x8xf32>
    %cst_47 = arith.constant dense<0.000000e+00> : vector<8x8xf32>
    %62 = tpu.matmul %59, %61, %cst_47 {dimension_numbers = #tpu.dot_dimension_numbers<[1], [0], [0], [1], [0, 0, 1, 1], [], []>} : vector<8x32xf32>, vector<32x8xf32>, vector<8x8xf32> -> vector<8x8xf32>
    %c0_48 = arith.constant 0 : index
    %c0_49 = arith.constant 0 : index
    %c0_50 = arith.constant 0 : index
    %63 = vector.load %arg9[%c0_48, %c0_49, %c0_50] : memref<1x1x8xf32, #tpu.memory_space<vmem>>, vector<1x1x8xf32>
    %64 = vector.shape_cast %63 : vector<1x1x8xf32> to vector<1x8xf32>
    %65 = vector.broadcast %64 : vector<1x8xf32> to vector<8x8xf32>
    %66 = arith.addf %62, %65 : vector<8x8xf32>
    %67 = tpu.iota {dimensions = array<i32: 1>} : vector<8x8xi32>
    %c4_i32 = arith.constant 4 : i32
    %68 = vector.broadcast %c4_i32 : i32 to vector<8x8xi32>
    %69 = arith.cmpi sge, %67, %68 : vector<8x8xi32>
    %cst_51 = arith.constant 1.000000e+00 : f32
    %70 = vector.broadcast %cst_51 : f32 to vector<8x8xf32>
    %71 = arith.subf %70, %66 : vector<8x8xf32>
    %cst_52 = arith.constant 0.000000e+00 : f32
    %72 = vector.broadcast %cst_52 : f32 to vector<8x8xf32>
    %73 = arith.maximumf %71, %72 : vector<8x8xf32>
    %74 = vector.broadcast %cst_52 : f32 to vector<8x8xf32>
    %75 = arith.subf %71, %74 : vector<8x8xf32>
    %76 = arith.cmpf one, %75, %75 : vector<8x8xf32>
    %77 = vector.broadcast %cst_52 : f32 to vector<8x8xf32>
    %78 = arith.addf %71, %77 : vector<8x8xf32>
    %79 = math.absf %75 : vector<8x8xf32>
    %cst_53 = arith.constant 0.000000e+00 : f32
    %80 = vector.broadcast %cst_53 : f32 to vector<8x8xf32>
    %81 = arith.subf %80, %79 : vector<8x8xf32>
    %82 = math.exp %81 : vector<8x8xf32>
    %83 = math.log1p %82 : vector<8x8xf32>
    %84 = arith.addf %73, %83 : vector<8x8xf32>
    %85 = arith.select %76, %78, %84 : vector<8x8xi1>, vector<8x8xf32>
    %cst_54 = arith.constant 1.000000e+00 : f32
    %86 = vector.broadcast %cst_54 : f32 to vector<8x8xf32>
    %87 = arith.subf %86, %85 : vector<8x8xf32>
    %cst_55 = arith.constant -5.000000e+00 : f32
    %88 = vector.broadcast %cst_55 : f32 to vector<8x8xf32>
    %89 = arith.subf %87, %88 : vector<8x8xf32>
    %cst_56 = arith.constant 0.000000e+00 : f32
    %90 = vector.broadcast %cst_56 : f32 to vector<8x8xf32>
    %91 = arith.maximumf %89, %90 : vector<8x8xf32>
    %92 = vector.broadcast %cst_56 : f32 to vector<8x8xf32>
    %93 = arith.subf %89, %92 : vector<8x8xf32>
    %94 = arith.cmpf one, %93, %93 : vector<8x8xf32>
    %95 = vector.broadcast %cst_56 : f32 to vector<8x8xf32>
    %96 = arith.addf %89, %95 : vector<8x8xf32>
    %97 = math.absf %93 : vector<8x8xf32>
    %cst_57 = arith.constant 0.000000e+00 : f32
    %98 = vector.broadcast %cst_57 : f32 to vector<8x8xf32>
    %99 = arith.subf %98, %97 : vector<8x8xf32>
    %100 = math.exp %99 : vector<8x8xf32>
    %101 = math.log1p %100 : vector<8x8xf32>
    %102 = arith.addf %91, %101 : vector<8x8xf32>
    %103 = arith.select %94, %96, %102 : vector<8x8xi1>, vector<8x8xf32>
    %cst_58 = arith.constant -5.000000e+00 : f32
    %104 = vector.broadcast %cst_58 : f32 to vector<8x8xf32>
    %105 = arith.addf %104, %103 : vector<8x8xf32>
    %106 = math.exp %105 : vector<8x8xf32>
    %107 = arith.select %69, %106, %66 : vector<8x8xi1>, vector<8x8xf32>
    %c0_59 = arith.constant 0 : index
    %c0_60 = arith.constant 0 : index
    %c0_61 = arith.constant 0 : index
    %108 = vector.load %arg10[%c0_59, %c0_60, %c0_61] : memref<1x8x8xf32, #tpu.memory_space<vmem>>, vector<1x8x8xf32>
    %109 = vector.shape_cast %108 : vector<1x8x8xf32> to vector<8x8xf32>
    %110 = vector.shape_cast %107 : vector<8x8xf32> to vector<1x8x8xf32>
    tpu.vector_store %arg10[%c0_59, %c0_60, %c0_61], %110 {strides = array<i32>} : memref<1x8x8xf32, #tpu.memory_space<vmem>>, vector<1x8x8xf32>,
    return
  }
  func.func @transform_0(%arg0: i32) -> (i32, i32, i32) {
    %c0_i32 = arith.constant 0 : i32
    %c0_i32_0 = arith.constant 0 : i32
    %c0_i32_1 = arith.constant 0 : i32
    return %arg0, %c0_i32, %c0_i32_0 : i32, i32, i32
  }
  func.func @transform_1(%arg0: i32) -> (i32, i32, i32) {
    %c0_i32 = arith.constant 0 : i32
    %c0_i32_0 = arith.constant 0 : i32
    %c0_i32_1 = arith.constant 0 : i32
    return %arg0, %c0_i32, %c0_i32_0 : i32, i32, i32
  }
  func.func @transform_2(%arg0: i32) -> (i32, i32, i32) {
    %c0_i32 = arith.constant 0 : i32
    %c0_i32_0 = arith.constant 0 : i32
    %c0_i32_1 = arith.constant 0 : i32
    return %arg0, %c0_i32, %c0_i32_0 : i32, i32, i32
  }
  func.func @transform_3(%arg0: i32) -> (i32, i32, i32) {
    %c0_i32 = arith.constant 0 : i32
    %c0_i32_0 = arith.constant 0 : i32
    %c0_i32_1 = arith.constant 0 : i32
    return %arg0, %c0_i32, %c0_i32_0 : i32, i32, i32
  }
  func.func @transform_4(%arg0: i32) -> (i32, i32, i32) {
    %c0_i32 = arith.constant 0 : i32
    %c0_i32_0 = arith.constant 0 : i32
    %c0_i32_1 = arith.constant 0 : i32
    return %arg0, %c0_i32, %c0_i32_0 : i32, i32, i32
  }
  func.func @transform_5(%arg0: i32) -> (i32, i32, i32, i32) {
    %c0_i32 = arith.constant 0 : i32
    %c0_i32_0 = arith.constant 0 : i32
    %c0_i32_1 = arith.constant 0 : i32
    %c0_i32_2 = arith.constant 0 : i32
    return %arg0, %c0_i32, %c0_i32_0, %c0_i32_1 : i32, i32, i32, i32
  }
  func.func @transform_6(%arg0: i32) -> (i32, i32, i32, i32) {
    %c0_i32 = arith.constant 0 : i32
    %c0_i32_0 = arith.constant 0 : i32
    %c0_i32_1 = arith.constant 0 : i32
    %c0_i32_2 = arith.constant 0 : i32
    return %arg0, %c0_i32, %c0_i32_0, %c0_i32_1 : i32, i32, i32, i32
  }
  func.func @transform_7(%arg0: i32) -> (i32, i32, i32) {
    %c0_i32 = arith.constant 0 : i32
    %c0_i32_0 = arith.constant 0 : i32
    %c0_i32_1 = arith.constant 0 : i32
    return %arg0, %c0_i32, %c0_i32_0 : i32, i32, i32
  }
  func.func @transform_8(%arg0: i32) -> (i32, i32, i32) {
    %c0_i32 = arith.constant 0 : i32
    %c0_i32_0 = arith.constant 0 : i32
    %c0_i32_1 = arith.constant 0 : i32
    return %arg0, %c0_i32, %c0_i32_0 : i32, i32, i32
  }
  func.func @transform_9(%arg0: i32) -> (i32, i32, i32) {
    %c0_i32 = arith.constant 0 : i32
    %c0_i32_0 = arith.constant 0 : i32
    %c0_i32_1 = arith.constant 0 : i32
    return %arg0, %c0_i32, %c0_i32_0 : i32, i32, i32
  }
}

</mosaic_0001>

<llo_original>
// kernel: tpu_custom_call.1
$region0: #{tpu_custom_call.1}
  #allocation0 [shape = 'u32[]', space=smem, size = 0x4, offset = 0x4, fixed_abs, tag = 'smem constant byte address 0x4 - core index']
  #allocation1 [shape = 'u32[72,128]{1,0:T(1,128)}', space=vmem, size = 0x9000, scoped, tag = 'internal scratch']
  %s0 = inlined_call_operand.vmem [shape: f32[2,8,4], index: 0, kind: input, shape index: {}]
  %s1 = inlined_call_operand.vmem [shape: f32[2,8,2], index: 1, kind: input, shape index: {}]
  %s2 = inlined_call_operand.vmem [shape: f32[2,4,32], index: 2, kind: input, shape index: {}]
  %s3 = inlined_call_operand.vmem [shape: f32[2,2,32], index: 3, kind: input, shape index: {}]
  %s4 = inlined_call_operand.vmem [shape: f32[2,1,32], index: 4, kind: input, shape index: {}]
  %s5 = inlined_call_operand.hbm [shape: f32[2,3,32,32], index: 5, kind: input, shape index: {}]
  %s6 = inlined_call_operand.vmem [shape: f32[2,3,1,32], index: 6, kind: input, shape index: {}]
  %s7 = inlined_call_operand.vmem [shape: f32[2,32,8], index: 7, kind: input, shape index: {}]
  %s8 = inlined_call_operand.vmem [shape: f32[2,1,8], index: 8, kind: input, shape index: {}]
  %s9 = inlined_call_operand.hbm [shape: f32[2,8,8], index: 9, kind: output, shape index: {}]
  %s10 = sld [smem:[#allocation0]]
  $region73: #{tpu_custom_call.1} parent=0
    _
  %s12 = ssub.s32 1, %s10
  %s13 = scalar_select 0, %s12, %s10
  $region1: #{tpu_custom_call.1} parent=0
    #allocation2 [shape = 'u8[98304]{0}', space=vmem, size = 0x18000, scoped, tag = 'input window, operand 5']
    #allocation3 [shape = 's32[2]{0}', space=sflag, size = 0x8, scoped, tag = 'scoped memory for tpu_custom_call.1']
    #allocation4 [shape = 's32[2]{0}', space=sflag, size = 0x8, scoped, tag = 'scoped memory for tpu_custom_call.1']
    #allocation5 [shape = 'u8[8192]{0}', space=vmem, size = 0x2000, scoped, tag = 'output window, operand 0']
    %14 = vsyncpa [#allocation3], 0
    %s15 = scalar_lea.sflag [#allocation3], 1
    %16 = vsyncpa %s15, 0
    %17 = vsyncpa [#allocation4], 0
    %s18 = scalar_lea.sflag [#allocation4], 1
    %19 = vsyncpa %s18, 0
    loop: start=0, step=1, limit=4
    $region2: #{tpu_custom_call.1} parent=1 // loop_pre_header
      _
    $region3: #{tpu_custom_call.1} parent=1 // loop_header
      %s21 = sphi 0, %s25
      %p22 = scmp.ge.s32.totalorder %s21, 4
      %s31 = sphi 0, %s33
      %s34 = sphi 0, %s31
      %s35 = sphi 0, %s34
      %s51 = sphi 0, %s35
      %s57 = sphi 0, %s59
      %s60 = sphi 0, %s57
      %s61 = sphi 0, %s60
      %s77 = sphi 0, %s61
      %s83 = sphi 0, %s85
      %s86 = sphi 0, %s83
      %s87 = sphi 0, %s86
      %s103 = sphi 0, %s87
      %s109 = sphi 0, %s111
      %s112 = sphi 0, %s109
      %s113 = sphi 0, %s112
      %s129 = sphi 0, %s113
      %s135 = sphi 0, %s137
      %s138 = sphi 0, %s135
      %s139 = sphi 0, %s138
      %s155 = sphi 0, %s139
      %s161 = sphi 0, %s163
      %s164 = sphi 0, %s161
      %s165 = sphi 0, %s164
      %s181 = sphi 0, %s165
      %s187 = sphi 0, %s189
      %s190 = sphi 0, %s187
      %s191 = sphi 0, %s190
      %s207 = sphi 0, %s191
      %s213 = sphi 0, %s215
      %s216 = sphi 0, %s213
      %s217 = sphi 0, %s216
      %s233 = sphi 0, %s217
      %s239 = sphi 0, %s241
      %s242 = sphi 0, %s239
      %s243 = sphi 0, %s242
      %s259 = sphi 0, %s243
      %s265 = sphi 0, %s267
      %s268 = sphi 0, %s265
      %s269 = sphi 0, %s268
      %s285 = sphi 0, %s269
    $region4: #{tpu_custom_call.1} parent=1 // loop_header_branch
      %24 = sbr.rel (%p22) target = $region8
    $region5: #{tpu_custom_call.1} parent=1 // loop_body
      %s26 = ssub.s32 %s21, 1
      %s27 = ssub.s32 %s21, 2
      %s28 = sadd.s32 %s21, 1
      %s29 = ssub.s32 %s21, %s28
      %p30 = scmp.eq.s32.totalorder %s29, 0
      %s32 = sadd.s32 %s31, 1
      %s33 = scalar_select %p30, %s31, %s32
      %p36 = pneg %p30
      %p37 = scmp.eq.s32.totalorder %s21, 1
      %p38 = por %p36, %p37
      %p39 = scmp.ne.s32.totalorder %s31, %s34
      %p40 = scmp.eq.s32.totalorder %s21, 0
      %p41 = por %p39, %p40
      %p42 = scmp.ne.s32.totalorder %s31, %s34
      %p43 = scmp.eq.s32.totalorder %s26, 1
      %p44 = por %p42, %p43
      %p45 = scmp.ne.s32.totalorder %s34, %s35
      %p46 = scmp.eq.s32.totalorder %s26, 0
      %p47 = por %p45, %p46
      %p48 = scmp.ne.s32.totalorder %s34, %s35
      %p49 = scmp.eq.s32.totalorder %s27, 1
      %p50 = por %p48, %p49
      %p52 = scmp.ne.s32.totalorder %s35, %s51
      %p53 = scmp.eq.s32.totalorder %s27, 0
      %p54 = por %p52, %p53
      %s55 = ssub.s32 %s21, %s28
      %p56 = scmp.eq.s32.totalorder %s55, 0
      %s58 = sadd.s32 %s57, 1
      %s59 = scalar_select %p56, %s57, %s58
      %p62 = pneg %p56
      %p63 = scmp.eq.s32.totalorder %s21, 1
      %p64 = por %p62, %p63
      %p65 = scmp.ne.s32.totalorder %s57, %s60
      %p66 = scmp.eq.s32.totalorder %s21, 0
      %p67 = por %p65, %p66
      %p68 = scmp.ne.s32.totalorder %s57, %s60
      %p69 = scmp.eq.s32.totalorder %s26, 1
      %p70 = por %p68, %p69
      %p71 = scmp.ne.s32.totalorder %s60, %s61
      %p72 = scmp.eq.s32.totalorder %s26, 0
      %p73 = por %p71, %p72
      %p74 = scmp.ne.s32.totalorder %s60, %s61
      %p75 = scmp.eq.s32.totalorder %s27, 1
      %p76 = por %p74, %p75
      %p78 = scmp.ne.s32.totalorder %s61, %s77
      %p79 = scmp.eq.s32.totalorder %s27, 0
      %p80 = por %p78, %p79
      %s81 = ssub.s32 %s21, %s28
      %p82 = scmp.eq.s32.totalorder %s81, 0
      %s84 = sadd.s32 %s83, 1
      %s85 = scalar_select %p82, %s83, %s84
      %p88 = pneg %p82
      %p89 = scmp.eq.s32.totalorder %s21, 1
      %p90 = por %p88, %p89
      %p91 = scmp.ne.s32.totalorder %s83, %s86
      %p92 = scmp.eq.s32.totalorder %s21, 0
      %p93 = por %p91, %p92
      %p94 = scmp.ne.s32.totalorder %s83, %s86
      %p95 = scmp.eq.s32.totalorder %s26, 1
      %p96 = por %p94, %p95
      %p97 = scmp.ne.s32.totalorder %s86, %s87
      %p98 = scmp.eq.s32.totalorder %s26, 0
      %p99 = por %p97, %p98
      %p100 = scmp.ne.s32.totalorder %s86, %s87
      %p101 = scmp.eq.s32.totalorder %s27, 1
      %p102 = por %p100, %p101
      %p104 = scmp.ne.s32.totalorder %s87, %s103
      %p105 = scmp.eq.s32.totalorder %s27, 0
      %p106 = por %p104, %p105
      %s107 = ssub.s32 %s21, %s28
      %p108 = scmp.eq.s32.totalorder %s107, 0
      %s110 = sadd.s32 %s109, 1
      %s111 = scalar_select %p108, %s109, %s110
      %p114 = pneg %p108
      %p115 = scmp.eq.s32.totalorder %s21, 1
      %p116 = por %p114, %p115
      %p117 = scmp.ne.s32.totalorder %s109, %s112
      %p118 = scmp.eq.s32.totalorder %s21, 0
      %p119 = por %p117, %p118
      %p120 = scmp.ne.s32.totalorder %s109, %s112
      %p121 = scmp.eq.s32.totalorder %s26, 1
      %p122 = por %p120, %p121
      %p123 = scmp.ne.s32.totalorder %s112, %s113
      %p124 = scmp.eq.s32.totalorder %s26, 0
      %p125 = por %p123, %p124
      %p126 = scmp.ne.s32.totalorder %s112, %s113
      %p127 = scmp.eq.s32.totalorder %s27, 1
      %p128 = por %p126, %p127
      %p130 = scmp.ne.s32.totalorder %s113, %s129
      %p131 = scmp.eq.s32.totalorder %s27, 0
      %p132 = por %p130, %p131
      %s133 = ssub.s32 %s21, %s28
      %p134 = scmp.eq.s32.totalorder %s133, 0
      %s136 = sadd.s32 %s135, 1
      %s137 = scalar_select %p134, %s135, %s136
      %p140 = pneg %p134
      %p141 = scmp.eq.s32.totalorder %s21, 1
      %p142 = por %p140, %p141
      %p143 = scmp.ne.s32.totalorder %s135, %s138
      %p144 = scmp.eq.s32.totalorder %s21, 0
      %p145 = por %p143, %p144
      %p146 = scmp.ne.s32.totalorder %s135, %s138
      %p147 = scmp.eq.s32.totalorder %s26, 1
      %p148 = por %p146, %p147
      %p149 = scmp.ne.s32.totalorder %s138, %s139
      %p150 = scmp.eq.s32.totalorder %s26, 0
      %p151 = por %p149, %p150
      %p152 = scmp.ne.s32.totalorder %s138, %s139
      %p153 = scmp.eq.s32.totalorder %s27, 1
      %p154 = por %p152, %p153
      %p156 = scmp.ne.s32.totalorder %s139, %s155
      %p157 = scmp.eq.s32.totalorder %s27, 0
      %p158 = por %p156, %p157
      %s159 = ssub.s32 %s21, %s28
      %p160 = scmp.eq.s32.totalorder %s159, 0
      %s162 = sadd.s32 %s161, 1
      %s163 = scalar_select %p160, %s161, %s162
      %p166 = pneg %p160
      %p167 = scmp.eq.s32.totalorder %s21, 1
      %p168 = por %p166, %p167
      %p169 = scmp.ne.s32.totalorder %s161, %s164
      %p170 = scmp.eq.s32.totalorder %s21, 0
      %p171 = por %p169, %p170
      %p172 = scmp.ne.s32.totalorder %s161, %s164
      %p173 = scmp.eq.s32.totalorder %s26, 1
      %p174 = por %p172, %p173
      %p175 = scmp.ne.s32.totalorder %s164, %s165
      %p176 = scmp.eq.s32.totalorder %s26, 0
      %p177 = por %p175, %p176
      %p178 = scmp.ne.s32.totalorder %s164, %s165
      %p179 = scmp.eq.s32.totalorder %s27, 1
      %p180 = por %p178, %p179
      %p182 = scmp.ne.s32.totalorder %s165, %s181
      %p183 = scmp.eq.s32.totalorder %s27, 0
      %p184 = por %p182, %p183
      %s185 = ssub.s32 %s21, %s28
      %p186 = scmp.eq.s32.totalorder %s185, 0
      %s188 = sadd.s32 %s187, 1
      %s189 = scalar_select %p186, %s187, %s188
      %p192 = pneg %p186
      %p193 = scmp.eq.s32.totalorder %s21, 1
      %p194 = por %p192, %p193
      %p195 = scmp.ne.s32.totalorder %s187, %s190
      %p196 = scmp.eq.s32.totalorder %s21, 0
      %p197 = por %p195, %p196
      %p198 = scmp.ne.s32.totalorder %s187, %s190
      %p199 = scmp.eq.s32.totalorder %s26, 1
      %p200 = por %p198, %p199
      %p201 = scmp.ne.s32.totalorder %s190, %s191
      %p202 = scmp.eq.s32.totalorder %s26, 0
      %p203 = por %p201, %p202
      %p204 = scmp.ne.s32.totalorder %s190, %s191
      %p205 = scmp.eq.s32.totalorder %s27, 1
      %p206 = por %p204, %p205
      %p208 = scmp.ne.s32.totalorder %s191, %s207
      %p209 = scmp.eq.s32.totalorder %s27, 0
      %p210 = por %p208, %p209
      %s211 = ssub.s32 %s21, %s28
      %p212 = scmp.eq.s32.totalorder %s211, 0
      %s214 = sadd.s32 %s213, 1
      %s215 = scalar_select %p212, %s213, %s214
      %p218 = pneg %p212
      %p219 = scmp.eq.s32.totalorder %s21, 1
      %p220 = por %p218, %p219
      %p221 = scmp.ne.s32.totalorder %s213, %s216
      %p222 = scmp.eq.s32.totalorder %s21, 0
      %p223 = por %p221, %p222
      %p224 = scmp.ne.s32.totalorder %s213, %s216
      %p225 = scmp.eq.s32.totalorder %s26, 1
      %p226 = por %p224, %p225
      %p227 = scmp.ne.s32.totalorder %s216, %s217
      %p228 = scmp.eq.s32.totalorder %s26, 0
      %p229 = por %p227, %p228
      %p230 = scmp.ne.s32.totalorder %s216, %s217
      %p231 = scmp.eq.s32.totalorder %s27, 1
      %p232 = por %p230, %p231
      %p234 = scmp.ne.s32.totalorder %s217, %s233
      %p235 = scmp.eq.s32.totalorder %s27, 0
      %p236 = por %p234, %p235
      %s237 = ssub.s32 %s21, %s28
      %p238 = scmp.eq.s32.totalorder %s237, 0
      %s240 = sadd.s32 %s239, 1
      %s241 = scalar_select %p238, %s239, %s240
      %p244 = pneg %p238
      %p245 = scmp.eq.s32.totalorder %s21, 1
      %p246 = por %p244, %p245
      %p247 = scmp.ne.s32.totalorder %s239, %s242
      %p248 = scmp.eq.s32.totalorder %s21, 0
      %p249 = por %p247, %p248
      %p250 = scmp.ne.s32.totalorder %s239, %s242
      %p251 = scmp.eq.s32.totalorder %s26, 1
      %p252 = por %p250, %p251
      %p253 = scmp.ne.s32.totalorder %s242, %s243
      %p254 = scmp.eq.s32.totalorder %s26, 0
      %p255 = por %p253, %p254
      %p256 = scmp.ne.s32.totalorder %s242, %s243
      %p257 = scmp.eq.s32.totalorder %s27, 1
      %p258 = por %p256, %p257
      %p260 = scmp.ne.s32.totalorder %s243, %s259
      %p261 = scmp.eq.s32.totalorder %s27, 0
      %p262 = por %p260, %p261
      %s263 = ssub.s32 %s21, %s28
      %p264 = scmp.eq.s32.totalorder %s263, 0
      %s266 = sadd.s32 %s265, 1
      %s267 = scalar_select %p264, %s265, %s266
      %p270 = pneg %p264
      %p271 = scmp.eq.s32.totalorder %s21, 1
      %p272 = por %p270, %p271
      %p273 = scmp.ne.s32.totalorder %s265, %s268
      %p274 = scmp.eq.s32.totalorder %s21, 0
      %p275 = por %p273, %p274
      %p276 = scmp.ne.s32.totalorder %s265, %s268
      %p277 = scmp.eq.s32.totalorder %s26, 1
      %p278 = por %p276, %p277
      %p279 = scmp.ne.s32.totalorder %s268, %s269
      %p280 = scmp.eq.s32.totalorder %s26, 0
      %p281 = por %p279, %p280
      %p282 = scmp.ne.s32.totalorder %s268, %s269
      %p283 = scmp.eq.s32.totalorder %s27, 1
      %p284 = por %p282, %p283
      %p286 = scmp.ne.s32.totalorder %s269, %s285
      %p287 = scmp.eq.s32.totalorder %s27, 0
      %p288 = por %p286, %p287
      %p289 = scmp.le.s32.totalorder 1, %s21
      %p290 = scmp.lt.s32.totalorder %s21, 3
      %p291 = pnand %p289, %p290
      %p292 = pneg %p291
      // Predicated region
      $region9: #{tpu_custom_call.1} parent=5 // pred_check
        _
      $region10: #{tpu_custom_call.1} parent=5 // pred_check_branch
        %294 = sbr.rel (%p291) target = $region12
      $region11: #{tpu_custom_call.1} parent=5 // pred_region
        %s295 = ssub.s32 %s21, 1
      $region12: #{tpu_custom_call.1} parent=5 // pred_fallthru
        _
      %p296 = scmp.lt.s32.totalorder %s21, 2
      // Predicated region
      $region13: #{tpu_custom_call.1} parent=5 // pred_check
        %p297 = pneg %p296
      $region14: #{tpu_custom_call.1} parent=5 // pred_check_branch
        %299 = sbr.rel (%p297) target = $region16
      $region15: #{tpu_custom_call.1} parent=5 // pred_region
        // Predicated region
        $region17: #{tpu_custom_call.1} parent=15 // pred_check
          %p300 = pneg %p41
        $region18: #{tpu_custom_call.1} parent=15 // pred_check_branch
          %302 = sbr.rel (%p300) target = $region20
        $region19: #{tpu_custom_call.1} parent=15 // pred_region
          %p303 = scmp.lt.s32.totalorder %s21, 1
          %s304 = scalar_select %p303, %s21, 1
          %s305 = smul.addr %s304, 8
          %s306 = scalar_lea.vmem %s0, %s305
        $region20: #{tpu_custom_call.1} parent=15 // pred_fallthru
          _
        // Predicated region
        $region21: #{tpu_custom_call.1} parent=15 // pred_check
          %p307 = pneg %p67
        $region22: #{tpu_custom_call.1} parent=15 // pred_check_branch
          %309 = sbr.rel (%p307) target = $region24
        $region23: #{tpu_custom_call.1} parent=15 // pred_region
          %p310 = scmp.lt.s32.totalorder %s21, 1
          %s311 = scalar_select %p310, %s21, 1
          %s312 = smul.addr %s311, 8
          %s313 = scalar_lea.vmem %s1, %s312
        $region24: #{tpu_custom_call.1} parent=15 // pred_fallthru
          _
        // Predicated region
        $region25: #{tpu_custom_call.1} parent=15 // pred_check
          %p314 = pneg %p93
        $region26: #{tpu_custom_call.1} parent=15 // pred_check_branch
          %316 = sbr.rel (%p314) target = $region28
        $region27: #{tpu_custom_call.1} parent=15 // pred_region
          %p317 = scmp.lt.s32.totalorder %s21, 1
          %s318 = scalar_select %p317, %s21, 1
          %s319 = smul.addr %s318, 4
          %s320 = scalar_lea.vmem %s2, %s319
        $region28: #{tpu_custom_call.1} parent=15 // pred_fallthru
          _
        // Predicated region
        $region29: #{tpu_custom_call.1} parent=15 // pred_check
          %p321 = pneg %p119
        $region30: #{tpu_custom_call.1} parent=15 // pred_check_branch
          %323 = sbr.rel (%p321) target = $region32
        $region31: #{tpu_custom_call.1} parent=15 // pred_region
          %p324 = scmp.lt.s32.totalorder %s21, 1
          %s325 = scalar_select %p324, %s21, 1
          %s326 = smul.addr %s325, 2
          %s327 = scalar_lea.vmem %s3, %s326
        $region32: #{tpu_custom_call.1} parent=15 // pred_fallthru
          _
        // Predicated region
        $region33: #{tpu_custom_call.1} parent=15 // pred_check
          %p328 = pneg %p145
        $region34: #{tpu_custom_call.1} parent=15 // pred_check_branch
          %330 = sbr.rel (%p328) target = $region36
        $region35: #{tpu_custom_call.1} parent=15 // pred_region
          %p331 = scmp.lt.s32.totalorder %s21, 1
          %s332 = scalar_select %p331, %s21, 1
          %s333 = scalar_lea.vmem %s4, %s332
        $region36: #{tpu_custom_call.1} parent=15 // pred_fallthru
          _
        // Predicated region
        $region37: #{tpu_custom_call.1} parent=15 // pred_check
          %p334 = pneg %p171
        $region38: #{tpu_custom_call.1} parent=15 // pred_check_branch
          %336 = sbr.rel (%p334) target = $region40
        $region39: #{tpu_custom_call.1} parent=15 // pred_region
          %s337 = sand.u32 %s161, 1
          %s338 = scalar_lea.sflag [#allocation3], %s337
          %s339 = sand.u32 %s161, 1
          %s340 = smul.addr %s339, 96
          %s341 = scalar_lea.vmem [#allocation2], %s340
          %343 = vsyncadd %s338, 0
          %s344 = smul.addr %s21, 12
          %s345 = smul.addr %s344, 8
          %s346 = scalar_lea.hbm %s5, %s345
          %s347 = sshll.u32 %s346, 4
          %s348 = int_to_ptr.hbm [resolvable:$true] %s347
          %s349 = sshll.u32 %s341, 4
          %s350 = int_to_ptr.vmem [resolvable:$true] %s349
          %355 = dma.hbm_to_vmem [thread:$0]  %s348, 1536, %s350, %s338, 128, 128, 8
        $region40: #{tpu_custom_call.1} parent=15 // pred_fallthru
          _
        // Predicated region
        $region41: #{tpu_custom_call.1} parent=15 // pred_check
          %p356 = pneg %p197
        $region42: #{tpu_custom_call.1} parent=15 // pred_check_branch
          %358 = sbr.rel (%p356) target = $region44
        $region43: #{tpu_custom_call.1} parent=15 // pred_region
          %p359 = scmp.lt.s32.totalorder %s21, 1
          %s360 = scalar_select %p359, %s21, 1
          %s361 = smul.addr %s360, 3
          %s362 = scalar_lea.vmem %s6, %s361
        $region44: #{tpu_custom_call.1} parent=15 // pred_fallthru
          _
        // Predicated region
        $region45: #{tpu_custom_call.1} parent=15 // pred_check
          %p363 = pneg %p223
        $region46: #{tpu_custom_call.1} parent=15 // pred_check_branch
          %365 = sbr.rel (%p363) target = $region48
        $region47: #{tpu_custom_call.1} parent=15 // pred_region
          %p366 = scmp.lt.s32.totalorder %s21, 1
          %s367 = scalar_select %p366, %s21, 1
          %s368 = smul.addr %s367, 4
          %s369 = smul.addr %s368, 8
          %s370 = scalar_lea.vmem %s7, %s369
        $region48: #{tpu_custom_call.1} parent=15 // pred_fallthru
          _
        // Predicated region
        $region49: #{tpu_custom_call.1} parent=15 // pred_check
          %p371 = pneg %p249
        $region50: #{tpu_custom_call.1} parent=15 // pred_check_branch
          %373 = sbr.rel (%p371) target = $region52
        $region51: #{tpu_custom_call.1} parent=15 // pred_region
          %p374 = scmp.lt.s32.totalorder %s21, 1
          %s375 = scalar_select %p374, %s21, 1
          %s376 = scalar_lea.vmem %s8, %s375
        $region52: #{tpu_custom_call.1} parent=15 // pred_fallthru
          _
      $region16: #{tpu_custom_call.1} parent=5 // pred_fallthru
        _
      %p377 = scmp.le.s32.totalorder 1, %s21
      %p378 = scmp.lt.s32.totalorder %s21, 3
      %p379 = pnand %p377, %p378
      %p380 = pneg %p379
      // Predicated region
      $region53: #{tpu_custom_call.1} parent=5 // pred_check
        _
      $region54: #{tpu_custom_call.1} parent=5 // pred_check_branch
        %382 = sbr.rel (%p379) target = $region56
      $region55: #{tpu_custom_call.1} parent=5 // pred_region
        %s383 = ssub.s32 %s21, 1
        %s384 = sand.u32 %s164, 1
        %s385 = scalar_lea.sflag [#allocation3], %s384
        %s386 = sand.u32 %s164, 1
        %s387 = smul.addr %s386, 96
        %s388 = scalar_lea.vmem [#allocation2], %s387
        // Predicated region
        $region57: #{tpu_custom_call.1} parent=55 // pred_check
          %p389 = pneg %p177
        $region58: #{tpu_custom_call.1} parent=55 // pred_check_branch
          %391 = sbr.rel (%p389) target = $region60
        $region59: #{tpu_custom_call.1} parent=55 // pred_region
          %393 = dma.done %s385, 1536
        $region60: #{tpu_custom_call.1} parent=55 // pred_fallthru
          _
        %p394 = scmp.lt.s32.totalorder %s26, 1
        %s395 = scalar_select %p394, %s26, 1
        %s396 = smul.addr %s395, 8
        %s397 = scalar_lea.vmem %s0, %s396
        %p398 = pneg %p47
        %p399 = pneg %p44
        %p400 = scmp.lt.s32.totalorder %s26, 1
        %s401 = scalar_select %p400, %s26, 1
        %s402 = smul.addr %s401, 8
        %s403 = scalar_lea.vmem %s1, %s402
        %p404 = pneg %p73
        %p405 = pneg %p70
        %p406 = scmp.lt.s32.totalorder %s26, 1
        %s407 = scalar_select %p406, %s26, 1
        %s408 = smul.addr %s407, 4
        %s409 = scalar_lea.vmem %s2, %s408
        %p410 = pneg %p99
        %p411 = pneg %p96
        %p412 = scmp.lt.s32.totalorder %s26, 1
        %s413 = scalar_select %p412, %s26, 1
        %s414 = smul.addr %s413, 2
        %s415 = scalar_lea.vmem %s3, %s414
        %p416 = pneg %p125
        %p417 = pneg %p122
        %p418 = scmp.lt.s32.totalorder %s26, 1
        %s419 = scalar_select %p418, %s26, 1
        %s420 = scalar_lea.vmem %s4, %s419
        %p421 = pneg %p151
        %p422 = pneg %p148
        %s423 = sand.u32 %s164, 1
        %s424 = scalar_lea.sflag [#allocation3], %s423
        %s425 = sand.u32 %s164, 1
        %s426 = smul.addr %s425, 96
        %s427 = scalar_lea.vmem [#allocation2], %s426
        %p428 = pneg %p177
        %p429 = pneg %p174
        %p430 = scmp.lt.s32.totalorder %s26, 1
        %s431 = scalar_select %p430, %s26, 1
        %s432 = smul.addr %s431, 3
        %s433 = scalar_lea.vmem %s6, %s432
        %p434 = pneg %p203
        %p435 = pneg %p200
        %p436 = scmp.lt.s32.totalorder %s26, 1
        %s437 = scalar_select %p436, %s26, 1
        %s438 = smul.addr %s437, 4
        %s439 = smul.addr %s438, 8
        %s440 = scalar_lea.vmem %s7, %s439
        %p441 = pneg %p229
        %p442 = pneg %p226
        %p443 = scmp.lt.s32.totalorder %s26, 1
        %s444 = scalar_select %p443, %s26, 1
        %s445 = scalar_lea.vmem %s8, %s444
        %p446 = pneg %p255
        %p447 = pneg %p252
        %p448 = pneg %p281
        %p449 = pneg %p278
        %s450 = sand.u32 %s268, 1
        %s451 = scalar_lea.sflag [#allocation4], %s450
        %s452 = sand.u32 %s268, 1
        %s453 = smul.addr %s452, 8
        %s454 = scalar_lea.vmem [#allocation5], %s453
        %p455 = scmp.lt.s32.totalorder %s26, 1
        %s456 = scalar_select %p455, %s26, 1
        %s457 = smul.addr %s456, 8
        %s458 = scalar_lea.vmem %s0, %s457
        %p459 = scmp.lt.s32.totalorder %s26, 1
        %s460 = scalar_select %p459, %s26, 1
        %s461 = smul.addr %s460, 8
        %s462 = scalar_lea.vmem %s1, %s461
        %p463 = scmp.lt.s32.totalorder %s26, 1
        %s464 = scalar_select %p463, %s26, 1
        %s465 = smul.addr %s464, 4
        %s466 = scalar_lea.vmem %s2, %s465
        %p467 = scmp.lt.s32.totalorder %s26, 1
        %s468 = scalar_select %p467, %s26, 1
        %s469 = smul.addr %s468, 2
        %s470 = scalar_lea.vmem %s3, %s469
        %p471 = scmp.lt.s32.totalorder %s26, 1
        %s472 = scalar_select %p471, %s26, 1
        %s473 = scalar_lea.vmem %s4, %s472
        %p474 = scmp.lt.s32.totalorder %s26, 1
        %s475 = scalar_select %p474, %s26, 1
        %s476 = smul.addr %s475, 3
        %s477 = scalar_lea.vmem %s6, %s476
        %p478 = scmp.lt.s32.totalorder %s26, 1
        %s479 = scalar_select %p478, %s26, 1
        %s480 = smul.addr %s479, 4
        %s481 = smul.addr %s480, 8
        %s482 = scalar_lea.vmem %s7, %s481
        %p483 = scmp.lt.s32.totalorder %s26, 1
        %s484 = scalar_select %p483, %s26, 1
        %s485 = scalar_lea.vmem %s8, %s484
        %v486 = vld [vmem:[%s458] sm:$0xff]
        %v487 = vld [vmem:[%s462] sm:$0xff]
        %v488 = vld [vmem:[%s466] sm:$0xf]
        %v489 = vld [vmem:[%s470] sm:$0x3]
        %vm490 = vcmask 15360
        %v492 = vsel %vm490, %v487, 0
        %vm494 = vcmask 1041408
        %v496 = vsel %vm494, %v489, 0
        %498 = vmatpush.msra.mxu0 0.0
        %499 = vmatpush.msra.mxu0 0.0
        %500 = vmatpush.msra.mxu0 0.0
        %501 = vmatpush.msra.mxu0 0.0
        %502 = vmatpush.msra.mxu0 0.0
        %503 = vmatpush.msra.mxu0 0.0
        %504 = vmatpush.msra.mxu0 0.0
        %505 = vmatpush.msra.mxu0 0.0
        %506 = vmatpush.msra.mxu0 0.0
        %507 = vmatpush.msra.mxu0 0.0
        %508 = vmatpush.msra.mxu0 0.0
        %509 = vmatpush.msra.mxu0 0.0
        %510 = vmatpush.msra.mxu0 0.0
        %511 = vmatpush.msra.mxu0 0.0
        %512 = vmatpush.msra.mxu0 0.0
        %513 = vmatpush.msra.mxu0 %v496
        %514 = vmatmul.f32.gmra.mxu0 %v492
        %v515 = vpop.f32.mrf.mxu0
        %v516 = vadd.f32 0.0, %v515
        %517 = vdwg.mxu0
        %vm518 = vcmask 31744
        %v520 = vsel %vm518, %v486, 0
        %vm522 = vcmask 1043456
        %v524 = vsel %vm522, %v488, 0
        %526 = vmatpush.msra.mxu0 0.0
        %527 = vmatpush.msra.mxu0 0.0
        %528 = vmatpush.msra.mxu0 0.0
        %529 = vmatpush.msra.mxu0 0.0
        %530 = vmatpush.msra.mxu0 0.0
        %531 = vmatpush.msra.mxu0 0.0
        %532 = vmatpush.msra.mxu0 0.0
        %533 = vmatpush.msra.mxu0 0.0
        %534 = vmatpush.msra.mxu0 0.0
        %535 = vmatpush.msra.mxu0 0.0
        %536 = vmatpush.msra.mxu0 0.0
        %537 = vmatpush.msra.mxu0 0.0
        %538 = vmatpush.msra.mxu0 0.0
        %539 = vmatpush.msra.mxu0 0.0
        %540 = vmatpush.msra.mxu0 0.0
        %541 = vmatpush.msra.mxu0 %v524
        %542 = vmatmul.f32.gmra.mxu0 %v520
        %v543 = vpop.f32.mrf.mxu0
        %v544 = vadd.f32 %v516, %v543
        %545 = vdwg.mxu0
        %v546 = vld [vmem:[%s473] sm:$0x1]
        %v548 = vperm.slane %v546, 0
        %v550 = vadd.f32 %v544, %v548
        %v551 = vxor.u32 %v550, 2147483648
        %v552 = vmul.f32 %v551, 1.442695
        %v553 = vpow.pop %v552
        %v554 = vadd.f32 %v553, 1.0
        %v555 = vrcp.pop %v554
        %v556 = vmul.f32 %v554, %v555
        %v557 = vsub.f32 1.0, %v556
        %v558 = vmul.f32 %v555, %v557
        %v559 = vadd.f32 %v555, %v558
        %vm560 = vweird.f32 %v554
        %vm561 = vweird.f32 %v555
        %vm562 = vmor %vm560, %vm561
        %v563 = vsel %vm562, %v555, %v559
        %v564 = vand.u32 2147483647, %v554
        %vm565 = vcmp.eq.f32.partialorder %v564, 8.507059e+37
        %v566 = vand.u32 %v554, 2147483648
        %v567 = vor.u32 1.1754944e-38, %v566
        %v568 = vsel %vm565, %v567, %v563
        %v569 = vmul.f32 1.0, %v568
        %v570 = vmul.f32 %v550, %v569
        %v571 = vld [vmem:[%s388] sm:$0xff]
        %v572 = vld [vmem:[%s388 + $0x8] sm:$0xff]
        %v573 = vld [vmem:[%s388 + $0x10] sm:$0xff]
        %v574 = vld [vmem:[%s388 + $0x18] sm:$0xff]
        %v575 = vld [vmem:[%s477] sm:$0x1]
        %v577 = vperm.slane %v575, 0
        %vm579 = vcmask 261120
        %v581 = vsel %vm579, %v570, 0
        %583 = vmatpush.msra.mxu0 0.0
        %584 = vmatpush.msra.mxu0 0.0
        %585 = vmatpush.msra.mxu0 0.0
        %586 = vmatpush.msra.mxu0 0.0
        %587 = vmatpush.msra.mxu0 0.0
        %588 = vmatpush.msra.mxu0 0.0
        %589 = vmatpush.msra.mxu0 0.0
        %590 = vmatpush.msra.mxu0 0.0
        %591 = vmatpush.msra.mxu0 0.0
        %592 = vmatpush.msra.mxu0 0.0
        %593 = vmatpush.msra.mxu0 0.0
        %594 = vmatpush.msra.mxu0 0.0
        %595 = vmatpush.msra.mxu0 %v574
        %596 = vmatpush.msra.mxu0 %v573
        %597 = vmatpush.msra.mxu0 %v572
        %598 = vmatpush.msra.mxu0 %v571
        %599 = vmatmul.f32.gmra.mxu0 %v581
        %v600 = vpop.f32.mrf.mxu0
        %v601 = vadd.f32 %v577, %v600
        %602 = vdwg.mxu0
        %v603 = vxor.u32 %v601, 2147483648
        %v604 = vmul.f32 %v603, 1.442695
        %v605 = vpow.pop %v604
        %v606 = vadd.f32 %v605, 1.0
        %v607 = vrcp.pop %v606
        %v608 = vmul.f32 %v606, %v607
        %v609 = vsub.f32 1.0, %v608
        %v610 = vmul.f32 %v607, %v609
        %v611 = vadd.f32 %v607, %v610
        %vm612 = vweird.f32 %v606
        %vm613 = vweird.f32 %v607
        %vm614 = vmor %vm612, %vm613
        %v615 = vsel %vm614, %v607, %v611
        %v616 = vand.u32 2147483647, %v606
        %vm617 = vcmp.eq.f32.partialorder %v616, 8.507059e+37
        %v618 = vand.u32 %v606, 2147483648
        %v619 = vor.u32 1.1754944e-38, %v618
        %v620 = vsel %vm617, %v619, %v615
        %v621 = vmul.f32 1.0, %v620
        %v622 = vmul.f32 %v601, %v621
        %s623 = scalar_lea.vmem %s388, 32 [#allocation2]
        %v624 = vld [vmem:[%s623] sm:$0xff]
        %v625 = vld [vmem:[%s623 + $0x8] sm:$0xff]
        %v626 = vld [vmem:[%s623 + $0x10] sm:$0xff]
        %v627 = vld [vmem:[%s623 + $0x18] sm:$0xff]
        %s628 = scalar_lea.vmem %s477, 1
        %v629 = vld [vmem:[%s628] sm:$0x1]
        %v631 = vperm.slane %v629, 0
        %v634 = vsel %vm579, %v622, 0
        %636 = vmatpush.msra.mxu0 0.0
        %637 = vmatpush.msra.mxu0 0.0
        %638 = vmatpush.msra.mxu0 0.0
        %639 = vmatpush.msra.mxu0 0.0
        %640 = vmatpush.msra.mxu0 0.0
        %641 = vmatpush.msra.mxu0 0.0
        %642 = vmatpush.msra.mxu0 0.0
        %643 = vmatpush.msra.mxu0 0.0
        %644 = vmatpush.msra.mxu0 0.0
        %645 = vmatpush.msra.mxu0 0.0
        %646 = vmatpush.msra.mxu0 0.0
        %647 = vmatpush.msra.mxu0 0.0
        %648 = vmatpush.msra.mxu0 %v627
        %649 = vmatpush.msra.mxu0 %v626
        %650 = vmatpush.msra.mxu0 %v625
        %651 = vmatpush.msra.mxu0 %v624
        %652 = vmatmul.f32.gmra.mxu0 %v634
        %v653 = vpop.f32.mrf.mxu0
        %v654 = vadd.f32 %v631, %v653
        %655 = vdwg.mxu0
        %v656 = vxor.u32 %v654, 2147483648
        %v657 = vmul.f32 %v656, 1.442695
        %v658 = vpow.pop %v657
        %v659 = vadd.f32 %v658, 1.0
        %v660 = vrcp.pop %v659
        %v661 = vmul.f32 %v659, %v660
        %v662 = vsub.f32 1.0, %v661
        %v663 = vmul.f32 %v660, %v662
        %v664 = vadd.f32 %v660, %v663
        %vm665 = vweird.f32 %v659
        %vm666 = vweird.f32 %v660
        %vm667 = vmor %vm665, %vm666
        %v668 = vsel %vm667, %v660, %v664
        %v669 = vand.u32 2147483647, %v659
        %vm670 = vcmp.eq.f32.partialorder %v669, 8.507059e+37
        %v671 = vand.u32 %v659, 2147483648
        %v672 = vor.u32 1.1754944e-38, %v671
        %v673 = vsel %vm670, %v672, %v668
        %v674 = vmul.f32 1.0, %v673
        %v675 = vmul.f32 %v654, %v674
        %s676 = scalar_lea.vmem %s388, 64 [#allocation2]
        %v677 = vld [vmem:[%s676] sm:$0xff]
        %v678 = vld [vmem:[%s676 + $0x8] sm:$0xff]
        %v679 = vld [vmem:[%s676 + $0x10] sm:$0xff]
        %v680 = vld [vmem:[%s676 + $0x18] sm:$0xff]
        %s681 = scalar_lea.vmem %s477, 2
        %v682 = vld [vmem:[%s681] sm:$0x1]
        %v684 = vperm.slane %v682, 0
        %v687 = vsel %vm579, %v675, 0
        %689 = vmatpush.msra.mxu0 0.0
        %690 = vmatpush.msra.mxu0 0.0
        %691 = vmatpush.msra.mxu0 0.0
        %692 = vmatpush.msra.mxu0 0.0
        %693 = vmatpush.msra.mxu0 0.0
        %694 = vmatpush.msra.mxu0 0.0
        %695 = vmatpush.msra.mxu0 0.0
        %696 = vmatpush.msra.mxu0 0.0
        %697 = vmatpush.msra.mxu0 0.0
        %698 = vmatpush.msra.mxu0 0.0
        %699 = vmatpush.msra.mxu0 0.0
        %700 = vmatpush.msra.mxu0 0.0
        %701 = vmatpush.msra.mxu0 %v680
        %702 = vmatpush.msra.mxu0 %v679
        %703 = vmatpush.msra.mxu0 %v678
        %704 = vmatpush.msra.mxu0 %v677
        %705 = vmatmul.f32.gmra.mxu0 %v687
        %v706 = vpop.f32.mrf.mxu0
        %v707 = vadd.f32 %v684, %v706
        %708 = vdwg.mxu0
        %v709 = vxor.u32 %v707, 2147483648
        %v710 = vmul.f32 %v709, 1.442695
        %v711 = vpow.pop %v710
        %v712 = vadd.f32 %v711, 1.0
        %v713 = vrcp.pop %v712
        %v714 = vmul.f32 %v712, %v713
        %v715 = vsub.f32 1.0, %v714
        %v716 = vmul.f32 %v713, %v715
        %v717 = vadd.f32 %v713, %v716
        %vm718 = vweird.f32 %v712
        %vm719 = vweird.f32 %v713
        %vm720 = vmor %vm718, %vm719
        %v721 = vsel %vm720, %v713, %v717
        %v722 = vand.u32 2147483647, %v712
        %vm723 = vcmp.eq.f32.partialorder %v722, 8.507059e+37
        %v724 = vand.u32 %v712, 2147483648
        %v725 = vor.u32 1.1754944e-38, %v724
        %v726 = vsel %vm723, %v725, %v721
        %v727 = vmul.f32 1.0, %v726
        %v728 = vmul.f32 %v707, %v727
        %v729 = vld [vmem:[%s482] sm:$0xff]
        %v730 = vld [vmem:[%s482 + $0x8] sm:$0xff]
        %v731 = vld [vmem:[%s482 + $0x10] sm:$0xff]
        %v732 = vld [vmem:[%s482 + $0x18] sm:$0xff]
        %v733 = vld [vmem:[%s485] sm:$0x1]
        %v735 = vperm.slane %v733, 0
        %v738 = vsel %vm579, %v728, 0
        %740 = vmatpush.msra.mxu0 0.0
        %741 = vmatpush.msra.mxu0 0.0
        %742 = vmatpush.msra.mxu0 0.0
        %743 = vmatpush.msra.mxu0 0.0
        %744 = vmatpush.msra.mxu0 0.0
        %745 = vmatpush.msra.mxu0 0.0
        %746 = vmatpush.msra.mxu0 0.0
        %747 = vmatpush.msra.mxu0 0.0
        %748 = vmatpush.msra.mxu0 0.0
        %749 = vmatpush.msra.mxu0 0.0
        %750 = vmatpush.msra.mxu0 0.0
        %751 = vmatpush.msra.mxu0 0.0
        %752 = vmatpush.msra.mxu0 %v732
        %753 = vmatpush.msra.mxu0 %v731
        %754 = vmatpush.msra.mxu0 %v730
        %755 = vmatpush.msra.mxu0 %v729
        %756 = vmatmul.f32.gmra.mxu0 %v738
        %v757 = vpop.f32.mrf.mxu0
        %v758 = vadd.f32 %v735, %v757
        %759 = vdwg.mxu0
        %v760 = vlaneseq
        %v761 = vand.u32 %v760, 127
        %vm762 = vcmp.ge.s32.totalorder %v761, 4
        %v763 = vsub.f32 1.0, %v758
        %v764 = vmax.f32 %v763, 0.0
        %vm765 = vcmp.ne.f32.partialorder %v763, %v763
        %v766 = vadd.f32 %v763, 0.0
        %v767 = vand.u32 2147483647, %v763
        %v768 = vsub.f32 0.0, %v767
        %v769 = vmul.f32 %v768, 1.442695
        %v770 = vpow.pop %v769
        %v771 = vadd.f32 %v770, 1.0
        %v772 = vlog2.pop %v771
        %v773 = vmul.f32 %v772, 0.6931472
        %v774 = vmul.f32 -0.5, %v770
        %v775 = vadd.f32 %v774, 1.0
        %v776 = vmul.f32 %v775, %v770
        %v777 = vand.u32 2147483647, %v770
        %vm778 = vcmp.lt.f32.partialorder %v777, 0.0004427343
        %v779 = vsel %vm778, %v776, %v773
        %v780 = vadd.f32 %v764, %v779
        %v781 = vsel %vm765, %v766, %v780
        %v782 = vsub.f32 1.0, %v781
        %v783 = vsub.f32 %v782, -5.0
        %v784 = vmax.f32 %v783, 0.0
        %vm785 = vcmp.ne.f32.partialorder %v783, %v783
        %v786 = vadd.f32 %v783, 0.0
        %v787 = vand.u32 2147483647, %v783
        %v788 = vsub.f32 0.0, %v787
        %v789 = vmul.f32 %v788, 1.442695
        %v790 = vpow.pop %v789
        %v791 = vadd.f32 %v790, 1.0
        %v792 = vlog2.pop %v791
        %v793 = vmul.f32 %v792, 0.6931472
        %v794 = vmul.f32 -0.5, %v790
        %v795 = vadd.f32 %v794, 1.0
        %v796 = vmul.f32 %v795, %v790
        %v797 = vand.u32 2147483647, %v790
        %vm798 = vcmp.lt.f32.partialorder %v797, 0.0004427343
        %v799 = vsel %vm798, %v796, %v793
        %v800 = vadd.f32 %v784, %v799
        %v801 = vsel %vm785, %v786, %v800
        %v802 = vadd.f32 %v801, -5.0
        %v803 = vmul.f32 %v802, 1.442695
        %v804 = vpow.pop %v803
        %v805 = vsel %vm762, %v804, %v758
        %vm806 = vcmask 64512
        %807 = vst.msk [vmem:[%s454] sm:$0xff] %vm806, %v805
        %s808 = sand.u32 %s268, 1
        %s809 = scalar_lea.sflag [#allocation4], %s808
        %s810 = sand.u32 %s268, 1
        %s811 = smul.addr %s810, 8
        %s812 = scalar_lea.vmem [#allocation5], %s811
        // Predicated region
        $region61: #{tpu_custom_call.1} parent=55 // pred_check
          %p813 = pneg %p278
        $region62: #{tpu_custom_call.1} parent=55 // pred_check_branch
          %815 = sbr.rel (%p813) target = $region64
        $region63: #{tpu_custom_call.1} parent=55 // pred_region
          %817 = vsyncadd %s809, 0
          %s818 = smul.addr %s26, 8
          %s819 = scalar_lea.hbm %s9, %s818
          %s821 = sshll.u32 %s812, 4
          %s822 = int_to_ptr.vmem [resolvable:$true] %s821
          %s823 = sshll.u32 %s819, 4
          %s824 = int_to_ptr.hbm [resolvable:$true] %s823
          %826 = dma.vmem_to_hbm [thread:$0]  %s822, 128, %s824, %s809
        $region64: #{tpu_custom_call.1} parent=55 // pred_fallthru
          _
      $region56: #{tpu_custom_call.1} parent=5 // pred_fallthru
        _
      %p827 = scmp.le.s32.totalorder 2, %s21
      // Predicated region
      $region65: #{tpu_custom_call.1} parent=5 // pred_check
        %p828 = pneg %p827
      $region66: #{tpu_custom_call.1} parent=5 // pred_check_branch
        %830 = sbr.rel (%p828) target = $region68
      $region67: #{tpu_custom_call.1} parent=5 // pred_region
        %s831 = ssub.s32 %s21, 2
        // Predicated region
        $region69: #{tpu_custom_call.1} parent=67 // pred_check
          %p832 = pneg %p284
        $region70: #{tpu_custom_call.1} parent=67 // pred_check_branch
          %834 = sbr.rel (%p832) target = $region72
        $region71: #{tpu_custom_call.1} parent=67 // pred_region
          %s835 = sand.u32 %s269, 1
          %s836 = scalar_lea.sflag [#allocation4], %s835
          %s837 = sand.u32 %s269, 1
          %s838 = smul.addr %s837, 8
          %s839 = scalar_lea.vmem [#allocation5], %s838
          %841 = dma.done %s836, 128
        $region72: #{tpu_custom_call.1} parent=67 // pred_fallthru
          _
      $region68: #{tpu_custom_call.1} parent=5 // pred_fallthru
        _
    $region6: #{tpu_custom_call.1} parent=1 // loop_footer
      %s25 = sadd.s32 1, %s21
    $region7: #{tpu_custom_call.1} parent=1 // loop_footer_branch
      %20 = sbr.rel target = $region3
    $region8: #{tpu_custom_call.1} parent=1 // loop_exit
      _
    %842 = vsyncpa [#allocation3], 1
    %s843 = scalar_lea.sflag [#allocation3], 1
    %844 = vsyncpa %s843, 1
    %845 = vsyncpa [#allocation4], 1
    %s846 = scalar_lea.sflag [#allocation4], 1
    %847 = vsyncpa %s846, 1

</llo_original>
